<compile_context>
chip_gen: v6e
topology: v6e:2x2x1
jax: 0.10.0
libtpu: 0.0.40
codegen_flags: <defaults>
</compile_context>

<pallas_src>
import functools
import math

import jax
import jax.numpy as jnp
from jax.experimental import pallas as pl
from jax.experimental.pallas import tpu as pltpu


def _mish(x):
    # Mish(x) = x * tanh(softplus(x)), softplus threshold=20 (PyTorch semantics).
    # tanh(log(1+e)) = e*(e+2) / (e*(e+2) + 2), with e = exp(x) clamped at x=20.
    e = jnp.exp(jnp.minimum(x, 20.0))
    n = e * (e + 2.0)
    r = n * pl.reciprocal(n + 2.0, approx=True)
    return jnp.where(x > 20.0, x, x * r)


def _gaussian_mlp_kernel(
    state_ref,                # [bb, cond_dim]  f32
    w0_ref, b0_ref,           # [cond_dim, H] bf16, [1, H] f32
    w1_ref, b1_ref,           # [H, H] bf16,        [1, H] f32
    w2_ref, b2_ref,           # [H, H] bf16,        [1, H] f32
    wh_ref, bh_ref,           # [H, P] bf16, [1, P] f32  (mean|logvar heads fused, zero-padded)
    out_ref,                  # [bb, P] f32: cols [0,out_dim)=mean, [out_dim,2*out_dim)=scale
    *, out_dim, lv_shift, lv_scale,
):
    x = state_ref[...].astype(jnp.bfloat16)

    # mlp_base: 3 Linear + Mish layers (out_activation is also Mish)
    h = _mish(jnp.dot(x, w0_ref[...], preferred_element_type=jnp.float32) + b0_ref[...])
    h = _mish(jnp.dot(h.astype(jnp.bfloat16), w1_ref[...],
                      preferred_element_type=jnp.float32) + b1_ref[...])
    h = _mish(jnp.dot(h.astype(jnp.bfloat16), w2_ref[...],
                      preferred_element_type=jnp.float32) + b2_ref[...])

    # Fused heads: tanh applies to both halves (tanh_output for mean, squash for logvar).
    t = jnp.tanh(jnp.dot(h.astype(jnp.bfloat16), wh_ref[...],
                         preferred_element_type=jnp.float32) + bh_ref[...])

    # scale = exp(0.5*(logvar_min + 0.5*(max-min)*(t+1))) = exp(0.5*(lv_shift + lv_scale*t))
    scale = jnp.exp(0.5 * (lv_shift + lv_scale * t))

    # Single lane-dense store: mean in the first out_dim columns, scale in the next out_dim.
    col = jax.lax.broadcasted_iota(jnp.int32, t.shape, 1)
    out_ref[...] = jnp.where(col < out_dim, t, scale)


@functools.partial(jax.jit, static_argnames=("std_min", "std_max", "block_b"))
def gaussian_mlp_forward(state, params, std_min, std_max, block_b=1024):
    """state: [B, cond_dim] f32. Returns (out_mean, out_scale), each [B, out_dim] f32."""
    (w0, b0), (w1, b1), (w2, b2), (wm, bm), (wv, bv) = params
    B, cond_dim = state.shape
    H = w0.shape[1]
    out_dim = wm.shape[1]

    # logvar affine folded into two static scalars.
    lv_min = math.log(std_min ** 2)
    lv_max = math.log(std_max ** 2)
    lv_scale = 0.5 * (lv_max - lv_min)
    lv_shift = lv_min + lv_scale

    # Fuse mean|logvar heads and zero-pad to a lane-dense width (multiple of 128).
    P = max(128, ((2 * out_dim + 127) // 128) * 128)
    wh = jnp.zeros((H, P), jnp.float32)
    wh = wh.at[:, :out_dim].set(wm).at[:, out_dim:2 * out_dim].set(wv)
    bh = jnp.zeros((1, P), jnp.float32)
    bh = bh.at[:, :out_dim].set(bm).at[:, out_dim:2 * out_dim].set(bv)

    # bf16 MXU operands (accumulation stays fp32 via preferred_element_type).
    w0b, w1b, w2b, whb = (w.astype(jnp.bfloat16) for w in (w0, w1, w2, wh))

    # Batch blocking: single block for small B; 8-aligned blocks when B scales up.
    bb = B if B <= block_b else block_b
    grid = (pl.cdiv(B, bb),)

    kernel = functools.partial(
        _gaussian_mlp_kernel, out_dim=out_dim, lv_shift=lv_shift, lv_scale=lv_scale)

    flops = 2 * B * (cond_dim * H + 2 * H * H + H * P)
    transcendentals = B * (2 * 3 * H + 2 * P)     # mish: exp+rcp per hidden elem; head: tanh+exp
    bytes_accessed = (B * cond_dim * 4                              # state in
                      + (cond_dim * H + 2 * H * H + H * P) * 2      # bf16 weights
                      + (3 * H + P) * 4                             # fp32 biases
                      + B * P * 4)                                  # fused output

    resident = lambda i: (0, 0)   # weights/biases: same block every grid step (VMEM-resident)
    out = pl.pallas_call(
        kernel,
        out_shape=jax.ShapeDtypeStruct((B, P), jnp.float32),
        grid_spec=pltpu.PrefetchScalarGridSpec(
            num_scalar_prefetch=0,
            grid=grid,
            in_specs=[
                pl.BlockSpec((bb, cond_dim), lambda i: (i, 0)),   # state streams over batch
                pl.BlockSpec((cond_dim, H), resident),
                pl.BlockSpec((1, H), resident),
                pl.BlockSpec((H, H), resident),
                pl.BlockSpec((1, H), resident),
                pl.BlockSpec((H, H), resident),
                pl.BlockSpec((1, H), resident),
                pl.BlockSpec((H, P), resident),
                pl.BlockSpec((1, P), resident),
            ],
            out_specs=pl.BlockSpec((bb, P), lambda i: (i, 0)),
        ),
        compiler_params=pltpu.CompilerParams(dimension_semantics=("parallel",)),
        cost_estimate=pl.CostEstimate(
            flops=flops, transcendentals=transcendentals, bytes_accessed=bytes_accessed),
    )(state, w0b, b0, w1b, b1, w2b, b2, whb, bh)

    out_mean = out[:, :out_dim]
    out_scale = out[:, out_dim:2 * out_dim]
    return out_mean, out_scale


def reference_forward(state, params, std_min, std_max):
    """Pure-JAX fp32 reference matching the PyTorch module semantics."""
    (w0, b0), (w1, b1), (w2, b2), (wm, bm), (wv, bv) = params

    def mish(x):
        sp = jnp.where(x > 20.0, x, jnp.log1p(jnp.exp(jnp.minimum(x, 20.0))))
        return x * jnp.tanh(sp)

    h = mish(state @ w0 + b0)
    h = mish(h @ w1 + b1)
    h = mish(h @ w2 + b2)
    mean = jnp.tanh(h @ wm + bm)
    lv = jnp.tanh(h @ wv + bv)
    lv_min = math.log(std_min ** 2)
    lv_max = math.log(std_max ** 2)
    lv = lv_min + 0.5 * (lv_max - lv_min) * (lv + 1.0)
    return mean, jnp.exp(0.5 * lv)


def init_params(key, cond_dim, mlp_dims, out_dim):
    """Deterministic synthetic parameters; layout [in, out] for weights."""
    dims = [cond_dim] + list(mlp_dims)
    params = []
    for i in range(len(dims) - 1):
        key, kw, kb = jax.random.split(key, 3)
        w = jax.random.normal(kw, (dims[i], dims[i + 1]), jnp.float32) * 0.05
        b = jax.random.normal(kb, (1, dims[i + 1]), jnp.float32) * 0.01
        params.append((w, b))
    for _ in range(2):  # mean head, logvar head
        key, kw, kb = jax.random.split(key, 3)
        w = jax.random.normal(kw, (dims[-1], out_dim), jnp.float32) * 0.05
        b = jax.random.normal(kb, (1, out_dim), jnp.float32) * 0.01
        params.append((w, b))
    return params


if __name__ == "__main__":
    # Small shapes consistent with the module defaults (fixed_std=None branch).
    batch = 2
    action_dim = 4
    action_horizon = 8
    cond_dim = 16
    mlp_dims = [128, 128, 128]
    out_dim = action_dim * action_horizon  # 32
    std_min, std_max = 0.01, 1.0

    key = jax.random.PRNGKey(0)
    key, k_state = jax.random.split(key)

    # cond['state'] analogue: [B, 1, cond_dim]; flattened to [B, cond_dim] (view(B, -1))
    cond_state = jax.random.normal(k_state, (batch, 1, cond_dim), jnp.float32)
    state = cond_state.reshape(batch, -1)

    params = init_params(key, cond_dim, mlp_dims, out_dim)

    out_mean, out_scale = gaussian_mlp_forward(state, params, std_min, std_max)
    jax.block_until_ready((out_mean, out_scale))

    # Shape / range checks
    assert out_mean.shape == (batch, action_horizon * action_dim)
    assert out_scale.shape == (batch, action_horizon * action_dim)
    assert bool(jnp.all(jnp.abs(out_mean) <= 1.0))
    assert bool(jnp.all(out_scale >= std_min - 1e-5))
    assert bool(jnp.all(out_scale <= std_max + 1e-5))

    # Numerical check against the fp32 pure-JAX reference (loose tolerance: kernel
    # uses bf16 MXU operands + single-exp Mish with approx reciprocal).
    ref_mean, ref_scale = reference_forward(state, params, std_min, std_max)
    assert bool(jnp.allclose(out_mean, ref_mean, atol=2e-2, rtol=5e-2))
    assert bool(jnp.allclose(out_scale, ref_scale, atol=2e-2, rtol=5e-2))

    print("KERNEL_OK")
</pallas_src>

<mosaic_0001>
module attributes {stable_mosaic.version = 11 : i64} {
  func.func @_gaussian_mlp_kernel(%arg0: i32, %arg1: memref<2x16xf32, #tpu.memory_space<vmem>>, %arg2: memref<16x128xbf16, #tpu.memory_space<vmem>>, %arg3: memref<1x128xf32, #tpu.memory_space<vmem>>, %arg4: memref<128x128xbf16, #tpu.memory_space<vmem>>, %arg5: memref<1x128xf32, #tpu.memory_space<vmem>>, %arg6: memref<128x128xbf16, #tpu.memory_space<vmem>>, %arg7: memref<1x128xf32, #tpu.memory_space<vmem>>, %arg8: memref<128x128xbf16, #tpu.memory_space<vmem>>, %arg9: memref<1x128xf32, #tpu.memory_space<vmem>>, %arg10: memref<2x128xf32, #tpu.memory_space<vmem>>) attributes {dimension_semantics = [#tpu.dimension_semantics<parallel>], iteration_bounds = array<i64: 1>, scalar_prefetch = 0 : i64, scratch_operands = 0 : i64, tpu.core_type = #tpu.core_type<tc>, window_params = [{transform_indices = @transform_0, window_bounds = array<i64: 2, 16>}, {pipeline_mode = #tpu.pipeline_mode<synchronous>, transform_indices = @transform_1, window_bounds = array<i64: 16, 128>}, {pipeline_mode = #tpu.pipeline_mode<synchronous>, transform_indices = @transform_2, window_bounds = array<i64: 1, 128>}, {pipeline_mode = #tpu.pipeline_mode<synchronous>, transform_indices = @transform_3, window_bounds = array<i64: 128, 128>}, {pipeline_mode = #tpu.pipeline_mode<synchronous>, transform_indices = @transform_4, window_bounds = array<i64: 1, 128>}, {pipeline_mode = #tpu.pipeline_mode<synchronous>, transform_indices = @transform_5, window_bounds = array<i64: 128, 128>}, {pipeline_mode = #tpu.pipeline_mode<synchronous>, transform_indices = @transform_6, window_bounds = array<i64: 1, 128>}, {pipeline_mode = #tpu.pipeline_mode<synchronous>, transform_indices = @transform_7, window_bounds = array<i64: 128, 128>}, {pipeline_mode = #tpu.pipeline_mode<synchronous>, transform_indices = @transform_8, window_bounds = array<i64: 1, 128>}, {transform_indices = @transform_9, window_bounds = array<i64: 2, 128>}]} {
    %c0 = arith.constant 0 : index
    %c0_0 = arith.constant 0 : index
    %0 = vector.load %arg1[%c0, %c0_0] : memref<2x16xf32, #tpu.memory_space<vmem>>, vector<2x16xf32>
    %1 = arith.truncf %0 : vector<2x16xf32> to vector<2x16xbf16>
    %c0_1 = arith.constant 0 : index
    %c0_2 = arith.constant 0 : index
    %2 = vector.load %arg2[%c0_1, %c0_2] : memref<16x128xbf16, #tpu.memory_space<vmem>>, vector<16x128xbf16>
    %cst = arith.constant dense<0.000000e+00> : vector<2x128xf32>
    %3 = tpu.matmul %1, %2, %cst {dimension_numbers = #tpu.dot_dimension_numbers<[1], [0], [0], [1], [0, 0, 1, 1], [], []>} : vector<2x16xbf16>, vector<16x128xbf16>, vector<2x128xf32> -> vector<2x128xf32>
    %c0_3 = arith.constant 0 : index
    %c0_4 = arith.constant 0 : index
    %4 = vector.load %arg3[%c0_3, %c0_4] : memref<1x128xf32, #tpu.memory_space<vmem>>, vector<1x128xf32>
    %5 = vector.broadcast %4 : vector<1x128xf32> to vector<2x128xf32>
    %6 = arith.addf %3, %5 : vector<2x128xf32>
    %cst_5 = arith.constant 2.000000e+01 : f32
    %7 = vector.broadcast %cst_5 : f32 to vector<2x128xf32>
    %8 = arith.minimumf %6, %7 : vector<2x128xf32>
    %9 = math.exp %8 : vector<2x128xf32>
    %cst_6 = arith.constant 2.000000e+00 : f32
    %10 = vector.broadcast %cst_6 : f32 to vector<2x128xf32>
    %11 = arith.addf %9, %10 : vector<2x128xf32>
    %12 = arith.mulf %9, %11 : vector<2x128xf32>
    %cst_7 = arith.constant 2.000000e+00 : f32
    %13 = vector.broadcast %cst_7 : f32 to vector<2x128xf32>
    %14 = arith.addf %12, %13 : vector<2x128xf32>
    %15 = tpu.reciprocal %14 {approx = true} : vector<2x128xf32> -> vector<2x128xf32>
    %16 = arith.mulf %12, %15 : vector<2x128xf32>
    %cst_8 = arith.constant 2.000000e+01 : f32
    %17 = vector.broadcast %cst_8 : f32 to vector<2x128xf32>
    %18 = arith.cmpf ogt, %6, %17 : vector<2x128xf32>
    %19 = arith.mulf %6, %16 : vector<2x128xf32>
    %20 = arith.select %18, %6, %19 : vector<2x128xi1>, vector<2x128xf32>
    %21 = arith.truncf %20 : vector<2x128xf32> to vector<2x128xbf16>
    %c0_9 = arith.constant 0 : index
    %c0_10 = arith.constant 0 : index
    %22 = vector.load %arg4[%c0_9, %c0_10] : memref<128x128xbf16, #tpu.memory_space<vmem>>, vector<128x128xbf16>
    %cst_11 = arith.constant dense<0.000000e+00> : vector<2x128xf32>
    %23 = tpu.matmul %21, %22, %cst_11 {dimension_numbers = #tpu.dot_dimension_numbers<[1], [0], [0], [1], [0, 0, 1, 1], [], []>} : vector<2x128xbf16>, vector<128x128xbf16>, vector<2x128xf32> -> vector<2x128xf32>
    %c0_12 = arith.constant 0 : index
    %c0_13 = arith.constant 0 : index
    %24 = vector.load %arg5[%c0_12, %c0_13] : memref<1x128xf32, #tpu.memory_space<vmem>>, vector<1x128xf32>
    %25 = vector.broadcast %24 : vector<1x128xf32> to vector<2x128xf32>
    %26 = arith.addf %23, %25 : vector<2x128xf32>
    %cst_14 = arith.constant 2.000000e+01 : f32
    %27 = vector.broadcast %cst_14 : f32 to vector<2x128xf32>
    %28 = arith.minimumf %26, %27 : vector<2x128xf32>
    %29 = math.exp %28 : vector<2x128xf32>
    %cst_15 = arith.constant 2.000000e+00 : f32
    %30 = vector.broadcast %cst_15 : f32 to vector<2x128xf32>
    %31 = arith.addf %29, %30 : vector<2x128xf32>
    %32 = arith.mulf %29, %31 : vector<2x128xf32>
    %cst_16 = arith.constant 2.000000e+00 : f32
    %33 = vector.broadcast %cst_16 : f32 to vector<2x128xf32>
    %34 = arith.addf %32, %33 : vector<2x128xf32>
    %35 = tpu.reciprocal %34 {approx = true} : vector<2x128xf32> -> vector<2x128xf32>
    %36 = arith.mulf %32, %35 : vector<2x128xf32>
    %cst_17 = arith.constant 2.000000e+01 : f32
    %37 = vector.broadcast %cst_17 : f32 to vector<2x128xf32>
    %38 = arith.cmpf ogt, %26, %37 : vector<2x128xf32>
    %39 = arith.mulf %26, %36 : vector<2x128xf32>
    %40 = arith.select %38, %26, %39 : vector<2x128xi1>, vector<2x128xf32>
    %41 = arith.truncf %40 : vector<2x128xf32> to vector<2x128xbf16>
    %c0_18 = arith.constant 0 : index
    %c0_19 = arith.constant 0 : index
    %42 = vector.load %arg6[%c0_18, %c0_19] : memref<128x128xbf16, #tpu.memory_space<vmem>>, vector<128x128xbf16>
    %cst_20 = arith.constant dense<0.000000e+00> : vector<2x128xf32>
    %43 = tpu.matmul %41, %42, %cst_20 {dimension_numbers = #tpu.dot_dimension_numbers<[1], [0], [0], [1], [0, 0, 1, 1], [], []>} : vector<2x128xbf16>, vector<128x128xbf16>, vector<2x128xf32> -> vector<2x128xf32>
    %c0_21 = arith.constant 0 : index
    %c0_22 = arith.constant 0 : index
    %44 = vector.load %arg7[%c0_21, %c0_22] : memref<1x128xf32, #tpu.memory_space<vmem>>, vector<1x128xf32>
    %45 = vector.broadcast %44 : vector<1x128xf32> to vector<2x128xf32>
    %46 = arith.addf %43, %45 : vector<2x128xf32>
    %cst_23 = arith.constant 2.000000e+01 : f32
    %47 = vector.broadcast %cst_23 : f32 to vector<2x128xf32>
    %48 = arith.minimumf %46, %47 : vector<2x128xf32>
    %49 = math.exp %48 : vector<2x128xf32>
    %cst_24 = arith.constant 2.000000e+00 : f32
    %50 = vector.broadcast %cst_24 : f32 to vector<2x128xf32>
    %51 = arith.addf %49, %50 : vector<2x128xf32>
    %52 = arith.mulf %49, %51 : vector<2x128xf32>
    %cst_25 = arith.constant 2.000000e+00 : f32
    %53 = vector.broadcast %cst_25 : f32 to vector<2x128xf32>
    %54 = arith.addf %52, %53 : vector<2x128xf32>
    %55 = tpu.reciprocal %54 {approx = true} : vector<2x128xf32> -> vector<2x128xf32>
    %56 = arith.mulf %52, %55 : vector<2x128xf32>
    %cst_26 = arith.constant 2.000000e+01 : f32
    %57 = vector.broadcast %cst_26 : f32 to vector<2x128xf32>
    %58 = arith.cmpf ogt, %46, %57 : vector<2x128xf32>
    %59 = arith.mulf %46, %56 : vector<2x128xf32>
    %60 = arith.select %58, %46, %59 : vector<2x128xi1>, vector<2x128xf32>
    %61 = arith.truncf %60 : vector<2x128xf32> to vector<2x128xbf16>
    %c0_27 = arith.constant 0 : index
    %c0_28 = arith.constant 0 : index
    %62 = vector.load %arg8[%c0_27, %c0_28] : memref<128x128xbf16, #tpu.memory_space<vmem>>, vector<128x128xbf16>
    %cst_29 = arith.constant dense<0.000000e+00> : vector<2x128xf32>
    %63 = tpu.matmul %61, %62, %cst_29 {dimension_numbers = #tpu.dot_dimension_numbers<[1], [0], [0], [1], [0, 0, 1, 1], [], []>} : vector<2x128xbf16>, vector<128x128xbf16>, vector<2x128xf32> -> vector<2x128xf32>
    %c0_30 = arith.constant 0 : index
    %c0_31 = arith.constant 0 : index
    %64 = vector.load %arg9[%c0_30, %c0_31] : memref<1x128xf32, #tpu.memory_space<vmem>>, vector<1x128xf32>
    %65 = vector.broadcast %64 : vector<1x128xf32> to vector<2x128xf32>
    %66 = arith.addf %63, %65 : vector<2x128xf32>
    %67 = math.tanh %66 : vector<2x128xf32>
    %cst_32 = arith.constant 4.60517025 : f32
    %68 = vector.broadcast %cst_32 : f32 to vector<2x128xf32>
    %69 = arith.mulf %68, %67 : vector<2x128xf32>
    %cst_33 = arith.constant -4.60517025 : f32
    %70 = vector.broadcast %cst_33 : f32 to vector<2x128xf32>
    %71 = arith.addf %70, %69 : vector<2x128xf32>
    %cst_34 = arith.constant 5.000000e-01 : f32
    %72 = vector.broadcast %cst_34 : f32 to vector<2x128xf32>
    %73 = arith.mulf %72, %71 : vector<2x128xf32>
    %74 = math.exp %73 : vector<2x128xf32>
    %75 = tpu.iota {dimensions = array<i32: 1>} : vector<2x128xi32>
    %c32_i32 = arith.constant 32 : i32
    %76 = vector.broadcast %c32_i32 : i32 to vector<2x128xi32>
    %77 = arith.cmpi slt, %75, %76 : vector<2x128xi32>
    %78 = arith.select %77, %67, %74 : vector<2x128xi1>, vector<2x128xf32>
    %c0_35 = arith.constant 0 : index
    %c0_36 = arith.constant 0 : index
    %79 = vector.load %arg10[%c0_35, %c0_36] : memref<2x128xf32, #tpu.memory_space<vmem>>, vector<2x128xf32>
    tpu.vector_store %arg10[%c0_35, %c0_36], %78 {strides = array<i32>} : memref<2x128xf32, #tpu.memory_space<vmem>>, vector<2x128xf32>,
    return
  }
  func.func @transform_0(%arg0: i32) -> (i32, i32) {
    %c0_i32 = arith.constant 0 : i32
    %c0_i32_0 = arith.constant 0 : i32
    return %arg0, %c0_i32 : i32, i32
  }
  func.func @transform_1(%arg0: i32) -> (i32, i32) {
    %c0_i32 = arith.constant 0 : i32
    %c0_i32_0 = arith.constant 0 : i32
    %c0_i32_1 = arith.constant 0 : i32
    return %c0_i32, %c0_i32_0 : i32, i32
  }
  func.func @transform_2(%arg0: i32) -> (i32, i32) {
    %c0_i32 = arith.constant 0 : i32
    %c0_i32_0 = arith.constant 0 : i32
    %c0_i32_1 = arith.constant 0 : i32
    return %c0_i32, %c0_i32_0 : i32, i32
  }
  func.func @transform_3(%arg0: i32) -> (i32, i32) {
    %c0_i32 = arith.constant 0 : i32
    %c0_i32_0 = arith.constant 0 : i32
    %c0_i32_1 = arith.constant 0 : i32
    return %c0_i32, %c0_i32_0 : i32, i32
  }
  func.func @transform_4(%arg0: i32) -> (i32, i32) {
    %c0_i32 = arith.constant 0 : i32
    %c0_i32_0 = arith.constant 0 : i32
    %c0_i32_1 = arith.constant 0 : i32
    return %c0_i32, %c0_i32_0 : i32, i32
  }
  func.func @transform_5(%arg0: i32) -> (i32, i32) {
    %c0_i32 = arith.constant 0 : i32
    %c0_i32_0 = arith.constant 0 : i32
    %c0_i32_1 = arith.constant 0 : i32
    return %c0_i32, %c0_i32_0 : i32, i32
  }
  func.func @transform_6(%arg0: i32) -> (i32, i32) {
    %c0_i32 = arith.constant 0 : i32
    %c0_i32_0 = arith.constant 0 : i32
    %c0_i32_1 = arith.constant 0 : i32
    return %c0_i32, %c0_i32_0 : i32, i32
  }
  func.func @transform_7(%arg0: i32) -> (i32, i32) {
    %c0_i32 = arith.constant 0 : i32
    %c0_i32_0 = arith.constant 0 : i32
    %c0_i32_1 = arith.constant 0 : i32
    return %c0_i32, %c0_i32_0 : i32, i32
  }
  func.func @transform_8(%arg0: i32) -> (i32, i32) {
    %c0_i32 = arith.constant 0 : i32
    %c0_i32_0 = arith.constant 0 : i32
    %c0_i32_1 = arith.constant 0 : i32
    return %c0_i32, %c0_i32_0 : i32, i32
  }
  func.func @transform_9(%arg0: i32) -> (i32, i32) {
    %c0_i32 = arith.constant 0 : i32
    %c0_i32_0 = arith.constant 0 : i32
    return %arg0, %c0_i32 : i32, i32
  }
}

</mosaic_0001>

<llo_original>
// kernel: gaussian_mlp_forward.1
$region0: #{gaussian_mlp_forward.1}
  #allocation0 [shape = 'u32[]', space=smem, size = 0x4, offset = 0x4, fixed_abs, tag = 'smem constant byte address 0x4 - core index']
  #allocation1 [shape = 'u32[144,128]{1,0:T(1,128)}', space=vmem, size = 0x12000, scoped, tag = 'internal scratch']
  %s0 = inlined_call_operand.vmem [shape: f32[2,16], index: 0, kind: input, shape index: {}]
  %s1 = inlined_call_operand.vmem [shape: bf16[16,128], index: 1, kind: input, shape index: {}]
  %s2 = inlined_call_operand.vmem [shape: f32[1,128], index: 2, kind: input, shape index: {}]
  %s3 = inlined_call_operand.vmem [shape: bf16[128,128], index: 3, kind: input, shape index: {}]
  %s4 = inlined_call_operand.vmem [shape: f32[1,128], index: 4, kind: input, shape index: {}]
  %s5 = inlined_call_operand.vmem [shape: bf16[128,128], index: 5, kind: input, shape index: {}]
  %s6 = inlined_call_operand.vmem [shape: f32[1,128], index: 6, kind: input, shape index: {}]
  %s7 = inlined_call_operand.vmem [shape: bf16[128,128], index: 7, kind: input, shape index: {}]
  %s8 = inlined_call_operand.vmem [shape: f32[1,128], index: 8, kind: input, shape index: {}]
  %s9 = inlined_call_operand.vmem [shape: f32[2,128], index: 9, kind: output, shape index: {}]
  %s10 = sld [smem:[#allocation0]]
  $region46: #{gaussian_mlp_forward.1} parent=0
    _
  %s12 = ssub.s32 1, %s10
  %s13 = scalar_select 0, %s12, %s10
  // Predicated region
  $region2: #{gaussian_mlp_forward.1} parent=0 // pred_check
    _
  $region3: #{gaussian_mlp_forward.1} parent=0 // pred_check_branch
    %15 = sbr.rel (0) target = $region5
  $region4: #{gaussian_mlp_forward.1} parent=0 // pred_region
    _
  $region5: #{gaussian_mlp_forward.1} parent=0 // pred_fallthru
    _
  // Predicated region
  $region6: #{gaussian_mlp_forward.1} parent=0 // pred_check
    _
  $region7: #{gaussian_mlp_forward.1} parent=0 // pred_check_branch
    %17 = sbr.rel (0) target = $region9
  $region8: #{gaussian_mlp_forward.1} parent=0 // pred_region
    _
  $region9: #{gaussian_mlp_forward.1} parent=0 // pred_fallthru
    _
  // Predicated region
  $region10: #{gaussian_mlp_forward.1} parent=0 // pred_check
    _
  $region11: #{gaussian_mlp_forward.1} parent=0 // pred_check_branch
    %19 = sbr.rel (0) target = $region13
  $region12: #{gaussian_mlp_forward.1} parent=0 // pred_region
    _
  $region13: #{gaussian_mlp_forward.1} parent=0 // pred_fallthru
    _
  // Predicated region
  $region14: #{gaussian_mlp_forward.1} parent=0 // pred_check
    _
  $region15: #{gaussian_mlp_forward.1} parent=0 // pred_check_branch
    %21 = sbr.rel (0) target = $region17
  $region16: #{gaussian_mlp_forward.1} parent=0 // pred_region
    _
  $region17: #{gaussian_mlp_forward.1} parent=0 // pred_fallthru
    _
  // Predicated region
  $region18: #{gaussian_mlp_forward.1} parent=0 // pred_check
    _
  $region19: #{gaussian_mlp_forward.1} parent=0 // pred_check_branch
    %23 = sbr.rel (0) target = $region21
  $region20: #{gaussian_mlp_forward.1} parent=0 // pred_region
    _
  $region21: #{gaussian_mlp_forward.1} parent=0 // pred_fallthru
    _
  // Predicated region
  $region22: #{gaussian_mlp_forward.1} parent=0 // pred_check
    _
  $region23: #{gaussian_mlp_forward.1} parent=0 // pred_check_branch
    %25 = sbr.rel (0) target = $region25
  $region24: #{gaussian_mlp_forward.1} parent=0 // pred_region
    _
  $region25: #{gaussian_mlp_forward.1} parent=0 // pred_fallthru
    _
  // Predicated region
  $region26: #{gaussian_mlp_forward.1} parent=0 // pred_check
    _
  $region27: #{gaussian_mlp_forward.1} parent=0 // pred_check_branch
    %27 = sbr.rel (0) target = $region29
  $region28: #{gaussian_mlp_forward.1} parent=0 // pred_region
    _
  $region29: #{gaussian_mlp_forward.1} parent=0 // pred_fallthru
    _
  // Predicated region
  $region30: #{gaussian_mlp_forward.1} parent=0 // pred_check
    _
  $region31: #{gaussian_mlp_forward.1} parent=0 // pred_check_branch
    %29 = sbr.rel (0) target = $region33
  $region32: #{gaussian_mlp_forward.1} parent=0 // pred_region
    _
  $region33: #{gaussian_mlp_forward.1} parent=0 // pred_fallthru
    _
  // Predicated region
  $region34: #{gaussian_mlp_forward.1} parent=0 // pred_check
    _
  $region35: #{gaussian_mlp_forward.1} parent=0 // pred_check_branch
    %31 = sbr.rel (0) target = $region37
  $region36: #{gaussian_mlp_forward.1} parent=0 // pred_region
    _
  $region37: #{gaussian_mlp_forward.1} parent=0 // pred_fallthru
    _
  %v33 = vld [vmem:[%s0] sm:$0x3]
  %v34 = vpack.c.bf16 %v33, %v33
  %v35 = vld [vmem:[%s1] sm:$0xf]
  %v36 = vld [vmem:[%s1 + $0x4] sm:$0xf]
  %v37 = vld [vmem:[%s2] sm:$0x1]
  %v39 = vlaneseq
  %v40 = vshrl.u32 %v39, 7
  %v41 = vsub.s32 0, %v40
  %v42 = vrot.slane %v37, %v41
  %v46 = vunpack.c.l.b16 %v35
  %v47 = vunpack.c.l.b16 %v36
  %v48 = vpack.c.b16 %v47, %v46
  %vm50 = vcmask 130048
  %v52 = vsel %vm50, %v34, 0
  %54 = vmatprep.subr.bf16.mxu0 0
  %55 = vmatpush1.bf16.msra.mxu0 0
  %56 = vmatprep.subr.bf16.mxu0 0
  %57 = vmatpush1.bf16.msra.mxu0 0
  %58 = vmatprep.subr.bf16.mxu0 0
  %59 = vmatpush1.bf16.msra.mxu0 0
  %60 = vmatprep.subr.bf16.mxu0 0
  %61 = vmatpush1.bf16.msra.mxu0 0
  %62 = vmatprep.subr.bf16.mxu0 0
  %63 = vmatpush1.bf16.msra.mxu0 0
  %64 = vmatprep.subr.bf16.mxu0 0
  %65 = vmatpush1.bf16.msra.mxu0 0
  %66 = vmatprep.subr.bf16.mxu0 0
  %67 = vmatpush1.bf16.msra.mxu0 0
  %68 = vmatprep.subr.bf16.mxu0 0
  %69 = vmatpush1.bf16.msra.mxu0 %v48
  %70 = vmatprep.subr.bf16.mxu0 0
  %71 = vmatpush2.bf16.msra.mxu0 0
  %72 = vmatprep.subr.bf16.mxu0 0
  %73 = vmatpush2.bf16.msra.mxu0 0
  %74 = vmatprep.subr.bf16.mxu0 0
  %75 = vmatpush2.bf16.msra.mxu0 0
  %76 = vmatprep.subr.bf16.mxu0 0
  %77 = vmatpush2.bf16.msra.mxu0 0
  %78 = vmatprep.subr.bf16.mxu0 0
  %79 = vmatpush2.bf16.msra.mxu0 0
  %80 = vmatprep.subr.bf16.mxu0 0
  %81 = vmatpush2.bf16.msra.mxu0 0
  %82 = vmatprep.subr.bf16.mxu0 0
  %83 = vmatpush2.bf16.msra.mxu0 0
  %84 = vmatprep.subr.bf16.mxu0 0
  %85 = vmatpush2.bf16.msra.mxu0 0
  %86 = vmatprep.mubr.bf16.mxu0 0
  %87 = vmatmul.mubr.bf16.gmra.mxu0 %v52
  %v88 = vpop.f32.mrf.mxu0
  %v89 = vadd.f32 %v42, %v88
  %v90 = vpop.f32.mrf.mxu0
  %v91 = vpop.f32.mrf.mxu0
  %v92 = vpop.f32.mrf.mxu0
  %93 = vdwg.mxu0
  %v94 = vmin.f32 %v89, 20.0
  %v95 = vmul.f32 %v94, 1.442695
  %v96 = vpow.pop %v95
  %v97 = vadd.f32 %v96, 2.0
  %v98 = vmul.f32 %v96, %v97
  %v99 = vadd.f32 %v98, 2.0
  %v100 = vrcp.pop %v99
  %v101 = vmul.f32 %v98, %v100
  %vm102 = vcmp.gt.f32.partialorder %v89, 20.0
  %v103 = vmul.f32 %v89, %v101
  %v104 = vsel %vm102, %v89, %v103
  %v105 = vpack.c.bf16 %v104, %v104
  %v106 = vld [vmem:[%s3] sm:$0xf]
  %v107 = vld [vmem:[%s3 + $0x4] sm:$0xf]
  %v108 = vld [vmem:[%s3 + $0x8] sm:$0xf]
  %v109 = vld [vmem:[%s3 + $0xc] sm:$0xf]
  %v110 = vld [vmem:[%s3 + $0x10] sm:$0xf]
  %v111 = vld [vmem:[%s3 + $0x14] sm:$0xf]
  %v112 = vld [vmem:[%s3 + $0x18] sm:$0xf]
  %v113 = vld [vmem:[%s3 + $0x1c] sm:$0xf]
  %v114 = vld [vmem:[%s3 + $0x20] sm:$0xf]
  %v115 = vld [vmem:[%s3 + $0x24] sm:$0xf]
  %v116 = vld [vmem:[%s3 + $0x28] sm:$0xf]
  %v117 = vld [vmem:[%s3 + $0x2c] sm:$0xf]
  %v118 = vld [vmem:[%s3 + $0x30] sm:$0xf]
  %v119 = vld [vmem:[%s3 + $0x34] sm:$0xf]
  %v120 = vld [vmem:[%s3 + $0x38] sm:$0xf]
  %v121 = vld [vmem:[%s3 + $0x3c] sm:$0xf]
  %v122 = vld [vmem:[%s4] sm:$0x1]
  %v124 = vlaneseq
  %v125 = vshrl.u32 %v124, 7
  %v126 = vsub.s32 0, %v125
  %v127 = vrot.slane %v122, %v126
  %v145 = vunpack.c.l.b16 %v106
  %v146 = vunpack.c.l.b16 %v107
  %v147 = vunpack.c.l.b16 %v108
  %v148 = vunpack.c.l.b16 %v109
  %v149 = vunpack.c.l.b16 %v110
  %v150 = vunpack.c.l.b16 %v111
  %v151 = vunpack.c.l.b16 %v112
  %v152 = vunpack.c.l.b16 %v113
  %v153 = vunpack.c.l.b16 %v114
  %v154 = vunpack.c.l.b16 %v115
  %v155 = vunpack.c.l.b16 %v116
  %v156 = vunpack.c.l.b16 %v117
  %v157 = vunpack.c.l.b16 %v118
  %v158 = vunpack.c.l.b16 %v119
  %v159 = vunpack.c.l.b16 %v120
  %v160 = vunpack.c.l.b16 %v121
  %v161 = vpack.c.b16 %v146, %v145
  %v162 = vpack.c.b16 %v148, %v147
  %v163 = vpack.c.b16 %v150, %v149
  %v164 = vpack.c.b16 %v152, %v151
  %v165 = vpack.c.b16 %v154, %v153
  %v166 = vpack.c.b16 %v156, %v155
  %v167 = vpack.c.b16 %v158, %v157
  %v168 = vpack.c.b16 %v160, %v159
  %177 = vmatprep.subr.bf16.mxu0 0
  %178 = vmatpush1.bf16.msra.mxu0 %v168
  %179 = vmatprep.subr.bf16.mxu0 0
  %180 = vmatpush1.bf16.msra.mxu0 %v167
  %181 = vmatprep.subr.bf16.mxu0 0
  %182 = vmatpush1.bf16.msra.mxu0 %v166
  %183 = vmatprep.subr.bf16.mxu0 0
  %184 = vmatpush1.bf16.msra.mxu0 %v165
  %185 = vmatprep.subr.bf16.mxu0 0
  %186 = vmatpush1.bf16.msra.mxu0 %v164
  %187 = vmatprep.subr.bf16.mxu0 0
  %188 = vmatpush1.bf16.msra.mxu0 %v163
  %189 = vmatprep.subr.bf16.mxu0 0
  %190 = vmatpush1.bf16.msra.mxu0 %v162
  %191 = vmatprep.subr.bf16.mxu0 0
  %192 = vmatpush1.bf16.msra.mxu0 %v161
  %193 = vmatprep.subr.bf16.mxu0 0
  %194 = vmatpush2.bf16.msra.mxu0 0
  %195 = vmatprep.subr.bf16.mxu0 0
  %196 = vmatpush2.bf16.msra.mxu0 0
  %197 = vmatprep.subr.bf16.mxu0 0
  %198 = vmatpush2.bf16.msra.mxu0 0
  %199 = vmatprep.subr.bf16.mxu0 0
  %200 = vmatpush2.bf16.msra.mxu0 0
  %201 = vmatprep.subr.bf16.mxu0 0
  %202 = vmatpush2.bf16.msra.mxu0 0
  %203 = vmatprep.subr.bf16.mxu0 0
  %204 = vmatpush2.bf16.msra.mxu0 0
  %205 = vmatprep.subr.bf16.mxu0 0
  %206 = vmatpush2.bf16.msra.mxu0 0
  %207 = vmatprep.subr.bf16.mxu0 0
  %208 = vmatpush2.bf16.msra.mxu0 0
  %209 = vmatprep.mubr.bf16.mxu0 0
  %210 = vmatmul.mubr.bf16.gmra.mxu0 %v105
  %v211 = vpop.f32.mrf.mxu0
  %v212 = vadd.f32 %v127, %v211
  %v213 = vpop.f32.mrf.mxu0
  %v214 = vpop.f32.mrf.mxu0
  %v215 = vpop.f32.mrf.mxu0
  %216 = vdwg.mxu0
  %v217 = vmin.f32 %v212, 20.0
  %v218 = vmul.f32 %v217, 1.442695
  %v219 = vpow.pop %v218
  %v220 = vadd.f32 %v219, 2.0
  %v221 = vmul.f32 %v219, %v220
  %v222 = vadd.f32 %v221, 2.0
  %v223 = vrcp.pop %v222
  %v224 = vmul.f32 %v221, %v223
  %vm225 = vcmp.gt.f32.partialorder %v212, 20.0
  %v226 = vmul.f32 %v212, %v224
  %v227 = vsel %vm225, %v212, %v226
  %v228 = vpack.c.bf16 %v227, %v227
  %v229 = vld [vmem:[%s5] sm:$0xf]
  %v230 = vld [vmem:[%s5 + $0x4] sm:$0xf]
  %v231 = vld [vmem:[%s5 + $0x8] sm:$0xf]
  %v232 = vld [vmem:[%s5 + $0xc] sm:$0xf]
  %v233 = vld [vmem:[%s5 + $0x10] sm:$0xf]
  %v234 = vld [vmem:[%s5 + $0x14] sm:$0xf]
  %v235 = vld [vmem:[%s5 + $0x18] sm:$0xf]
  %v236 = vld [vmem:[%s5 + $0x1c] sm:$0xf]
  %v237 = vld [vmem:[%s5 + $0x20] sm:$0xf]
  %v238 = vld [vmem:[%s5 + $0x24] sm:$0xf]
  %v239 = vld [vmem:[%s5 + $0x28] sm:$0xf]
  %v240 = vld [vmem:[%s5 + $0x2c] sm:$0xf]
  %v241 = vld [vmem:[%s5 + $0x30] sm:$0xf]
  %v242 = vld [vmem:[%s5 + $0x34] sm:$0xf]
  %v243 = vld [vmem:[%s5 + $0x38] sm:$0xf]
  %v244 = vld [vmem:[%s5 + $0x3c] sm:$0xf]
  %v245 = vld [vmem:[%s6] sm:$0x1]
  %v247 = vlaneseq
  %v248 = vshrl.u32 %v247, 7
  %v249 = vsub.s32 0, %v248
  %v250 = vrot.slane %v245, %v249
  %v268 = vunpack.c.l.b16 %v229
  %v269 = vunpack.c.l.b16 %v230
  %v270 = vunpack.c.l.b16 %v231
  %v271 = vunpack.c.l.b16 %v232
  %v272 = vunpack.c.l.b16 %v233
  %v273 = vunpack.c.l.b16 %v234
  %v274 = vunpack.c.l.b16 %v235
  %v275 = vunpack.c.l.b16 %v236
  %v276 = vunpack.c.l.b16 %v237
  %v277 = vunpack.c.l.b16 %v238
  %v278 = vunpack.c.l.b16 %v239
  %v279 = vunpack.c.l.b16 %v240
  %v280 = vunpack.c.l.b16 %v241
  %v281 = vunpack.c.l.b16 %v242
  %v282 = vunpack.c.l.b16 %v243
  %v283 = vunpack.c.l.b16 %v244
  %v284 = vpack.c.b16 %v269, %v268
  %v285 = vpack.c.b16 %v271, %v270
  %v286 = vpack.c.b16 %v273, %v272
  %v287 = vpack.c.b16 %v275, %v274
  %v288 = vpack.c.b16 %v277, %v276
  %v289 = vpack.c.b16 %v279, %v278
  %v290 = vpack.c.b16 %v281, %v280
  %v291 = vpack.c.b16 %v283, %v282
  %300 = vmatprep.subr.bf16.mxu0 0
  %301 = vmatpush1.bf16.msra.mxu0 %v291
  %302 = vmatprep.subr.bf16.mxu0 0
  %303 = vmatpush1.bf16.msra.mxu0 %v290
  %304 = vmatprep.subr.bf16.mxu0 0
  %305 = vmatpush1.bf16.msra.mxu0 %v289
  %306 = vmatprep.subr.bf16.mxu0 0
  %307 = vmatpush1.bf16.msra.mxu0 %v288
  %308 = vmatprep.subr.bf16.mxu0 0
  %309 = vmatpush1.bf16.msra.mxu0 %v287
  %310 = vmatprep.subr.bf16.mxu0 0
  %311 = vmatpush1.bf16.msra.mxu0 %v286
  %312 = vmatprep.subr.bf16.mxu0 0
  %313 = vmatpush1.bf16.msra.mxu0 %v285
  %314 = vmatprep.subr.bf16.mxu0 0
  %315 = vmatpush1.bf16.msra.mxu0 %v284
  %316 = vmatprep.subr.bf16.mxu0 0
  %317 = vmatpush2.bf16.msra.mxu0 0
  %318 = vmatprep.subr.bf16.mxu0 0
  %319 = vmatpush2.bf16.msra.mxu0 0
  %320 = vmatprep.subr.bf16.mxu0 0
  %321 = vmatpush2.bf16.msra.mxu0 0
  %322 = vmatprep.subr.bf16.mxu0 0
  %323 = vmatpush2.bf16.msra.mxu0 0
  %324 = vmatprep.subr.bf16.mxu0 0
  %325 = vmatpush2.bf16.msra.mxu0 0
  %326 = vmatprep.subr.bf16.mxu0 0
  %327 = vmatpush2.bf16.msra.mxu0 0
  %328 = vmatprep.subr.bf16.mxu0 0
  %329 = vmatpush2.bf16.msra.mxu0 0
  %330 = vmatprep.subr.bf16.mxu0 0
  %331 = vmatpush2.bf16.msra.mxu0 0
  %332 = vmatprep.mubr.bf16.mxu0 0
  %333 = vmatmul.mubr.bf16.gmra.mxu0 %v228
  %v334 = vpop.f32.mrf.mxu0
  %v335 = vadd.f32 %v250, %v334
  %v336 = vpop.f32.mrf.mxu0
  %v337 = vpop.f32.mrf.mxu0
  %v338 = vpop.f32.mrf.mxu0
  %339 = vdwg.mxu0
  %v340 = vmin.f32 %v335, 20.0
  %v341 = vmul.f32 %v340, 1.442695
  %v342 = vpow.pop %v341
  %v343 = vadd.f32 %v342, 2.0
  %v344 = vmul.f32 %v342, %v343
  %v345 = vadd.f32 %v344, 2.0
  %v346 = vrcp.pop %v345
  %v347 = vmul.f32 %v344, %v346
  %vm348 = vcmp.gt.f32.partialorder %v335, 20.0
  %v349 = vmul.f32 %v335, %v347
  %v350 = vsel %vm348, %v335, %v349
  %v351 = vpack.c.bf16 %v350, %v350
  %v352 = vld [vmem:[%s7] sm:$0xf]
  %v353 = vld [vmem:[%s7 + $0x4] sm:$0xf]
  %v354 = vld [vmem:[%s7 + $0x8] sm:$0xf]
  %v355 = vld [vmem:[%s7 + $0xc] sm:$0xf]
  %v356 = vld [vmem:[%s7 + $0x10] sm:$0xf]
  %v357 = vld [vmem:[%s7 + $0x14] sm:$0xf]
  %v358 = vld [vmem:[%s7 + $0x18] sm:$0xf]
  %v359 = vld [vmem:[%s7 + $0x1c] sm:$0xf]
  %v360 = vld [vmem:[%s7 + $0x20] sm:$0xf]
  %v361 = vld [vmem:[%s7 + $0x24] sm:$0xf]
  %v362 = vld [vmem:[%s7 + $0x28] sm:$0xf]
  %v363 = vld [vmem:[%s7 + $0x2c] sm:$0xf]
  %v364 = vld [vmem:[%s7 + $0x30] sm:$0xf]
  %v365 = vld [vmem:[%s7 + $0x34] sm:$0xf]
  %v366 = vld [vmem:[%s7 + $0x38] sm:$0xf]
  %v367 = vld [vmem:[%s7 + $0x3c] sm:$0xf]
  %v368 = vld [vmem:[%s8] sm:$0x1]
  %v370 = vlaneseq
  %v371 = vshrl.u32 %v370, 7
  %v372 = vsub.s32 0, %v371
  %v373 = vrot.slane %v368, %v372
  %v391 = vunpack.c.l.b16 %v352
  %v392 = vunpack.c.l.b16 %v353
  %v393 = vunpack.c.l.b16 %v354
  %v394 = vunpack.c.l.b16 %v355
  %v395 = vunpack.c.l.b16 %v356
  %v396 = vunpack.c.l.b16 %v357
  %v397 = vunpack.c.l.b16 %v358
  %v398 = vunpack.c.l.b16 %v359
  %v399 = vunpack.c.l.b16 %v360
  %v400 = vunpack.c.l.b16 %v361
  %v401 = vunpack.c.l.b16 %v362
  %v402 = vunpack.c.l.b16 %v363
  %v403 = vunpack.c.l.b16 %v364
  %v404 = vunpack.c.l.b16 %v365
  %v405 = vunpack.c.l.b16 %v366
  %v406 = vunpack.c.l.b16 %v367
  %v407 = vpack.c.b16 %v392, %v391
  %v408 = vpack.c.b16 %v394, %v393
  %v409 = vpack.c.b16 %v396, %v395
  %v410 = vpack.c.b16 %v398, %v397
  %v411 = vpack.c.b16 %v400, %v399
  %v412 = vpack.c.b16 %v402, %v401
  %v413 = vpack.c.b16 %v404, %v403
  %v414 = vpack.c.b16 %v406, %v405
  %423 = vmatprep.subr.bf16.mxu0 0
  %424 = vmatpush1.bf16.msra.mxu0 %v414
  %425 = vmatprep.subr.bf16.mxu0 0
  %426 = vmatpush1.bf16.msra.mxu0 %v413
  %427 = vmatprep.subr.bf16.mxu0 0
  %428 = vmatpush1.bf16.msra.mxu0 %v412
  %429 = vmatprep.subr.bf16.mxu0 0
  %430 = vmatpush1.bf16.msra.mxu0 %v411
  %431 = vmatprep.subr.bf16.mxu0 0
  %432 = vmatpush1.bf16.msra.mxu0 %v410
  %433 = vmatprep.subr.bf16.mxu0 0
  %434 = vmatpush1.bf16.msra.mxu0 %v409
  %435 = vmatprep.subr.bf16.mxu0 0
  %436 = vmatpush1.bf16.msra.mxu0 %v408
  %437 = vmatprep.subr.bf16.mxu0 0
  %438 = vmatpush1.bf16.msra.mxu0 %v407
  %439 = vmatprep.subr.bf16.mxu0 0
  %440 = vmatpush2.bf16.msra.mxu0 0
  %441 = vmatprep.subr.bf16.mxu0 0
  %442 = vmatpush2.bf16.msra.mxu0 0
  %443 = vmatprep.subr.bf16.mxu0 0
  %444 = vmatpush2.bf16.msra.mxu0 0
  %445 = vmatprep.subr.bf16.mxu0 0
  %446 = vmatpush2.bf16.msra.mxu0 0
  %447 = vmatprep.subr.bf16.mxu0 0
  %448 = vmatpush2.bf16.msra.mxu0 0
  %449 = vmatprep.subr.bf16.mxu0 0
  %450 = vmatpush2.bf16.msra.mxu0 0
  %451 = vmatprep.subr.bf16.mxu0 0
  %452 = vmatpush2.bf16.msra.mxu0 0
  %453 = vmatprep.subr.bf16.mxu0 0
  %454 = vmatpush2.bf16.msra.mxu0 0
  %455 = vmatprep.mubr.bf16.mxu0 0
  %456 = vmatmul.mubr.bf16.gmra.mxu0 %v351
  %v457 = vpop.f32.mrf.mxu0
  %v458 = vadd.f32 %v373, %v457
  %v459 = vpop.f32.mrf.mxu0
  %v460 = vpop.f32.mrf.mxu0
  %v461 = vpop.f32.mrf.mxu0
  %462 = vdwg.mxu0
  %v463 = vtanh.pop %v458
  %v464 = vmul.f32 %v463, 4.6051702
  %v465 = vadd.f32 %v464, -4.6051702
  %v466 = vmul.f32 %v465, 0.5
  %v467 = vmul.f32 %v466, 1.442695
  %v468 = vpow.pop %v467
  %v469 = vlaneseq
  %v470 = vand.u32 %v469, 127
  %vm471 = vcmp.lt.s32.totalorder %v470, 32
  %v472 = vsel %vm471, %v463, %v468
  %473 = vst [vmem:[%s9] sm:$0x3] %v472
  // Predicated region
  $region38: #{gaussian_mlp_forward.1} parent=0 // pred_check
    _
  $region39: #{gaussian_mlp_forward.1} parent=0 // pred_check_branch
    %475 = sbr.rel (0) target = $region41
  $region40: #{gaussian_mlp_forward.1} parent=0 // pred_region
    _
  $region41: #{gaussian_mlp_forward.1} parent=0 // pred_fallthru
    _
  // Predicated region
  $region42: #{gaussian_mlp_forward.1} parent=0 // pred_check
    _
  $region43: #{gaussian_mlp_forward.1} parent=0 // pred_check_branch
    %477 = sbr.rel (0) target = $region45
  $region44: #{gaussian_mlp_forward.1} parent=0 // pred_region
    _
  $region45: #{gaussian_mlp_forward.1} parent=0 // pred_fallthru
    _

</llo_original>
